<compile_context>
chip_gen: v7x
topology: tpu7x:2x2x1
jax: 0.10.0
libtpu: 0.0.40
codegen_flags: <defaults>
</compile_context>

<pallas_src>
import functools

import jax
import jax.numpy as jnp
from jax.experimental import pallas as pl
from jax.experimental.pallas import tpu as pltpu


# ---------------------------------------------------------------------------
# Fused kernel:
#   logits[s] = mean( GELU(X_s @ W + b_enc) ) * w_cls + b_cls   per sample s
#   X block : (block_m, block_k)   W block : (block_k, d_pad)  (bf16)
#   acc scratch : (block_m, d_pad) f32     grid = (row_blocks, kb), K last.
# ---------------------------------------------------------------------------
def _sapiens_fused_kernel(x_ref, w_ref, b_ref, wc_ref, bc_ref, o_ref, acc_ref,
                          *, t_frames, d_real, spb):
    k = pl.program_id(1)

    @pl.when(k == 0)
    def _init():
        acc_ref[...] = jnp.zeros_like(acc_ref)

    # bf16 MXU matmul with f32 accumulation; W arrives pre-cast to bf16,
    # X is cast in-kernel (it is only read once from HBM).
    acc_ref[...] += jnp.dot(
        x_ref[...].astype(jnp.bfloat16),
        w_ref[...],
        preferred_element_type=jnp.float32,
    )

    @pl.when(k == pl.num_programs(1) - 1)
    def _finalize():
        block_m = acc_ref.shape[0]
        h = acc_ref[...] + b_ref[...]          # (block_m, d_pad); padded cols == 0
        g = jax.nn.gelu(h)                     # gelu(0) == 0 -> padding adds nothing
        inv = 1.0 / (t_frames * d_real)        # AdaptiveAvgPool2d(1) divisor (real D)
        if spb == 1:
            mean = jnp.sum(g) * inv
            o_ref[...] = (mean * wc_ref[...] + bc_ref[...]).astype(o_ref.dtype)
        else:
            # Pool T consecutive rows per sample with a tiny selection matmul
            # (avoids int division / awkward reshapes in the epilogue).
            samp = jax.lax.broadcasted_iota(jnp.int32, (spb, block_m), 0)
            row = jax.lax.broadcasted_iota(jnp.int32, (spb, block_m), 1)
            lo = samp * t_frames
            sel = ((row >= lo) & (row < lo + t_frames)).astype(jnp.float32)
            pooled = jnp.dot(sel, g, preferred_element_type=jnp.float32)  # (spb, d_pad)
            means = jnp.sum(pooled, axis=-1, keepdims=True) * inv         # (spb, 1)
            o_ref[...] = (means * wc_ref[...] + bc_ref[...]).astype(o_ref.dtype)


# ---------------------------------------------------------------------------
# Tiling heuristics
# ---------------------------------------------------------------------------
def _vmem_plan():
    """Per-generation VMEM plan -> (tile budget bytes, scoped vmem limit bytes).

    v5e/v6e (128 MiB physical) -> limit 64 MiB, budget 48 MiB.
    v7x     (64 MiB per TC)    -> limit 32 MiB, budget 24 MiB.
    Falls back to the conservative v7x numbers if the query is unavailable.
    """
    phys = 64 << 20
    try:
        info = pltpu.get_tpu_info()
        phys = int(getattr(info, "vmem_capacity_bytes", phys)) or phys
    except Exception:
        pass
    limit = min(phys // 2, 96 << 20)
    budget = (limit * 3) // 4
    return budget, limit


def _choose_block_rows(B, T, cap_rows=512):
    """Samples per row block.  Pack as many rows as fit under cap_rows (bigger
    M tiles amortize W streaming + ~0.35us/step overhead), but keep >= 2 row
    blocks whenever each block still has >= 8 rows so both v7x TensorCores get
    work (no-op on single-TC v5e/v6e)."""
    spb = max(1, min(B, max(1, cap_rows // T)))
    while B % spb:
        spb -= 1
    if B // spb < 2 and B % 2 == 0 and (B // 2) * T >= 8:
        spb = B // 2
        while B % spb:
            spb -= 1
    return spb


def _choose_block_k(K, block_m, d_pad, nc_pad, budget_bytes):
    """Largest 128-multiple divisor of K whose resident VMEM fits the budget.
    Counts double-buffered f32 X tiles + the in-kernel bf16 X copy,
    double-buffered bf16 W tiles, the f32 accumulator scratch and constants."""
    def cost(tk):
        x_f32 = 2 * 4 * block_m * tk           # double-buffered f32 X tile
        x_bf16 = 2 * block_m * tk              # in-kernel bf16 copy of X tile
        w_bf16 = 2 * 2 * tk * d_pad            # double-buffered bf16 W tile
        scratch = 4 * block_m * d_pad          # f32 accumulator
        consts = 2 * 4 * (d_pad + 2 * nc_pad) + 2 * 4 * block_m * nc_pad
        return x_f32 + x_bf16 + w_bf16 + scratch + consts

    if K % 128 != 0:
        return K                               # small / irregular K: single tile
    best = 128
    for tk in range(128, K + 1, 128):
        if K % tk == 0 and cost(tk) <= budget_bytes:
            best = tk
    return best


# ---------------------------------------------------------------------------
# Full SapiensCLS forward
# ---------------------------------------------------------------------------
def sapiens_cls_forward(x, w_enc, b_enc, w_cls, b_cls, *, block_k=None):
    B, T, C, H, W = x.shape
    K = C * H * W
    D = w_enc.shape[1]
    NC = w_cls.shape[0]

    d_pad = pl.cdiv(D, 128) * 128
    nc_pad = pl.cdiv(NC, 128) * 128

    # Fold batch into matmul rows:  x.view(B*T, C, H, W) flattened per frame
    # == reshape(B*T, K), then split rows into row_blocks tiles of spb*T rows.
    spb = _choose_block_rows(B, T)
    row_blocks = B // spb
    block_m = spb * T
    x3d = x.reshape(row_blocks, block_m, K).astype(jnp.float32)

    # Static weights: pre-cast W to bf16 once, zero-pad D / NC lanes to 128.
    w_bf16 = jnp.pad(w_enc.astype(jnp.bfloat16), ((0, 0), (0, d_pad - D)))
    b_row = jnp.pad(b_enc.reshape(1, D).astype(jnp.float32),
                    ((0, 0), (0, d_pad - D)))
    wc_row = jnp.pad(w_cls.reshape(1, NC).astype(jnp.float32),
                     ((0, 0), (0, nc_pad - NC)))
    bc_row = jnp.pad(b_cls.reshape(1, NC).astype(jnp.float32),
                     ((0, 0), (0, nc_pad - NC)))

    budget, vmem_limit = _vmem_plan()
    if block_k is None:
        block_k = _choose_block_k(K, block_m, d_pad, nc_pad, budget)
    assert K % block_k == 0, (K, block_k)
    kb = K // block_k

    kernel = functools.partial(_sapiens_fused_kernel,
                               t_frames=T, d_real=D, spb=spb)

    out = pl.pallas_call(
        kernel,
        out_shape=jax.ShapeDtypeStruct((row_blocks, spb, nc_pad), jnp.float32),
        grid_spec=pltpu.PrefetchScalarGridSpec(
            num_scalar_prefetch=0,
            grid=(row_blocks, kb),                       # K reduction last
            in_specs=[
                pl.BlockSpec((None, block_m, block_k), lambda m, k: (m, 0, k)),  # X
                pl.BlockSpec((block_k, d_pad), lambda m, k: (k, 0)),             # W bf16
                pl.BlockSpec((1, d_pad), lambda m, k: (0, 0)),                   # b_enc
                pl.BlockSpec((1, nc_pad), lambda m, k: (0, 0)),                  # w_cls
                pl.BlockSpec((1, nc_pad), lambda m, k: (0, 0)),                  # b_cls
            ],
            out_specs=pl.BlockSpec((None, spb, nc_pad), lambda m, k: (m, 0, 0)),
            scratch_shapes=[pltpu.VMEM((block_m, d_pad), jnp.float32)],
        ),
        compiler_params=pltpu.CompilerParams(
            dimension_semantics=("parallel", "arbitrary"),
            vmem_limit_bytes=int(vmem_limit)),
    )(x3d, w_bf16, b_row, wc_row, bc_row)

    return out.reshape(B, nc_pad)[:, :NC]


if __name__ == "__main__":
    B, T, C, H, W = 4, 4, 4, 16, 16
    D_ENC, NUM_CLASSES = 32, 10

    key = jax.random.PRNGKey(0)
    kx, kw1, kb1, kw2, kb2 = jax.random.split(key, 5)

    x = jax.random.normal(kx, (B, T, C, H, W), dtype=jnp.float32)

    # Deterministic synthetic parameters (shapes implied by the module).
    w_enc = jax.random.normal(kw1, (C * H * W, D_ENC), dtype=jnp.float32) * 0.02
    b_enc = jax.random.normal(kb1, (1, D_ENC), dtype=jnp.float32) * 0.02
    w_cls = jax.random.normal(kw2, (NUM_CLASSES, 1), dtype=jnp.float32) * 0.5
    b_cls = jax.random.normal(kb2, (NUM_CLASSES,), dtype=jnp.float32) * 0.1

    # block_k=256 exercises the 4-step K reduction + pl.when init/finalize and
    # the 2-row-block parallel axis; block_k=None auto-sizes from the per-
    # generation VMEM budget (here it would pick block_k == K).
    out = sapiens_cls_forward(x, w_enc, b_enc, w_cls, b_cls, block_k=256)
    out = jax.block_until_ready(out)
    assert out.shape == (B, NUM_CLASSES), out.shape
    assert out.dtype == jnp.float32

    # Pure-JAX reference (same bf16-in / f32-accumulate matmul contract).
    K = C * H * W
    h_ref = jnp.dot(
        x.reshape(B * T, K).astype(jnp.bfloat16),
        w_enc.astype(jnp.bfloat16),
        preferred_element_type=jnp.float32,
    ) + b_enc
    feats_ref = jax.nn.gelu(h_ref).reshape(B, -1)
    ref_out = feats_ref.mean(axis=-1, keepdims=True) @ w_cls.T + b_cls[None, :]
    assert jnp.allclose(out, ref_out, atol=1e-3, rtol=1e-3), (
        float(jnp.max(jnp.abs(out - ref_out))))

    print("KERNEL_OK")
</pallas_src>

<mosaic_0001>
module attributes {stable_mosaic.version = 11 : i64} {
  func.func @_sapiens_fused_kernel(%arg0: i32, %arg1: i32, %arg2: memref<1x8x256xf32, #tpu.memory_space<vmem>>, %arg3: memref<256x128xbf16, #tpu.memory_space<vmem>>, %arg4: memref<1x128xf32, #tpu.memory_space<vmem>>, %arg5: memref<1x128xf32, #tpu.memory_space<vmem>>, %arg6: memref<1x128xf32, #tpu.memory_space<vmem>>, %arg7: memref<1x2x128xf32, #tpu.memory_space<vmem>>, %arg8: memref<8x128xf32, #tpu.memory_space<vmem>>) attributes {dimension_semantics = [#tpu.dimension_semantics<parallel>, #tpu.dimension_semantics<arbitrary>], iteration_bounds = array<i64: 2, 4>, scalar_prefetch = 0 : i64, scratch_operands = 1 : i64, tpu.core_type = #tpu.core_type<tc>, window_params = [{transform_indices = @transform_0, window_bounds = array<i64: 1, 8, 256>}, {transform_indices = @transform_1, window_bounds = array<i64: 256, 128>}, {pipeline_mode = #tpu.pipeline_mode<synchronous>, transform_indices = @transform_2, window_bounds = array<i64: 1, 128>}, {pipeline_mode = #tpu.pipeline_mode<synchronous>, transform_indices = @transform_3, window_bounds = array<i64: 1, 128>}, {pipeline_mode = #tpu.pipeline_mode<synchronous>, transform_indices = @transform_4, window_bounds = array<i64: 1, 128>}, {transform_indices = @transform_5, window_bounds = array<i64: 1, 2, 128>}]} {
    %c0_i32 = arith.constant 0 : i32
    %0 = arith.cmpi eq, %arg1, %c0_i32 : i32
    %1 = arith.extui %0 : i1 to i32
    %c0_i32_0 = arith.constant 0 : i32
    %2 = arith.cmpi ne, %1, %c0_i32_0 : i32
    scf.if %2 {
      %cst_10 = arith.constant 0.000000e+00 : f32
      %14 = vector.broadcast %cst_10 : f32 to vector<8x128xf32>
      %c0_11 = arith.constant 0 : index
      %c0_12 = arith.constant 0 : index
      %15 = vector.load %arg8[%c0_11, %c0_12] : memref<8x128xf32, #tpu.memory_space<vmem>>, vector<8x128xf32>
      tpu.vector_store %arg8[%c0_11, %c0_12], %14 {strides = array<i32>} : memref<8x128xf32, #tpu.memory_space<vmem>>, vector<8x128xf32>,
    } else {
    }
    %c0 = arith.constant 0 : index
    %c0_1 = arith.constant 0 : index
    %3 = vector.load %arg8[%c0, %c0_1] : memref<8x128xf32, #tpu.memory_space<vmem>>, vector<8x128xf32>
    %c0_2 = arith.constant 0 : index
    %c0_3 = arith.constant 0 : index
    %c0_4 = arith.constant 0 : index
    %4 = vector.load %arg2[%c0_2, %c0_3, %c0_4] : memref<1x8x256xf32, #tpu.memory_space<vmem>>, vector<1x8x256xf32>
    %5 = vector.shape_cast %4 : vector<1x8x256xf32> to vector<8x256xf32>
    %6 = arith.truncf %5 : vector<8x256xf32> to vector<8x256xbf16>
    %c0_5 = arith.constant 0 : index
    %c0_6 = arith.constant 0 : index
    %7 = vector.load %arg3[%c0_5, %c0_6] : memref<256x128xbf16, #tpu.memory_space<vmem>>, vector<256x128xbf16>
    %cst = arith.constant dense<0.000000e+00> : vector<8x128xf32>
    %8 = tpu.matmul %6, %7, %cst {dimension_numbers = #tpu.dot_dimension_numbers<[1], [0], [0], [1], [0, 0, 1, 1], [], []>} : vector<8x256xbf16>, vector<256x128xbf16>, vector<8x128xf32> -> vector<8x128xf32>
    %9 = arith.addf %3, %8 : vector<8x128xf32>
    %c0_7 = arith.constant 0 : index
    %c0_8 = arith.constant 0 : index
    %10 = vector.load %arg8[%c0_7, %c0_8] : memref<8x128xf32, #tpu.memory_space<vmem>>, vector<8x128xf32>
    tpu.vector_store %arg8[%c0_7, %c0_8], %9 {strides = array<i32>} : memref<8x128xf32, #tpu.memory_space<vmem>>, vector<8x128xf32>,
    %c3_i32 = arith.constant 3 : i32
    %11 = arith.cmpi eq, %arg1, %c3_i32 : i32
    %12 = arith.extui %11 : i1 to i32
    %c0_i32_9 = arith.constant 0 : i32
    %13 = arith.cmpi ne, %12, %c0_i32_9 : i32
    scf.if %13 {
      %c0_10 = arith.constant 0 : index
      %c0_11 = arith.constant 0 : index
      %14 = vector.load %arg8[%c0_10, %c0_11] : memref<8x128xf32, #tpu.memory_space<vmem>>, vector<8x128xf32>
      %c0_12 = arith.constant 0 : index
      %c0_13 = arith.constant 0 : index
      %15 = vector.load %arg4[%c0_12, %c0_13] : memref<1x128xf32, #tpu.memory_space<vmem>>, vector<1x128xf32>
      %16 = vector.broadcast %15 : vector<1x128xf32> to vector<8x128xf32>
      %17 = arith.addf %14, %16 : vector<8x128xf32>
      %18 = arith.mulf %17, %17 : vector<8x128xf32>
      %19 = arith.mulf %17, %18 : vector<8x128xf32>
      %cst_14 = arith.constant 4.471500e-02 : f32
      %20 = vector.broadcast %cst_14 : f32 to vector<8x128xf32>
      %21 = arith.mulf %20, %19 : vector<8x128xf32>
      %22 = arith.addf %17, %21 : vector<8x128xf32>
      %cst_15 = arith.constant 0.797884583 : f32
      %23 = vector.broadcast %cst_15 : f32 to vector<8x128xf32>
      %24 = arith.mulf %23, %22 : vector<8x128xf32>
      %25 = math.tanh %24 : vector<8x128xf32>
      %cst_16 = arith.constant 1.000000e+00 : f32
      %26 = vector.broadcast %cst_16 : f32 to vector<8x128xf32>
      %27 = arith.addf %26, %25 : vector<8x128xf32>
      %cst_17 = arith.constant 5.000000e-01 : f32
      %28 = vector.broadcast %cst_17 : f32 to vector<8x128xf32>
      %29 = arith.mulf %28, %27 : vector<8x128xf32>
      %30 = arith.mulf %17, %29 : vector<8x128xf32>
      %31 = tpu.iota {dimensions = array<i32: 0>} : vector<2x8xi32>
      %32 = tpu.iota {dimensions = array<i32: 1>} : vector<2x8xi32>
      %c4_i32 = arith.constant 4 : i32
      %33 = vector.broadcast %c4_i32 : i32 to vector<2x8xi32>
      %34 = arith.muli %31, %33 : vector<2x8xi32>
      %35 = arith.cmpi sge, %32, %34 : vector<2x8xi32>
      %c4_i32_18 = arith.constant 4 : i32
      %36 = vector.broadcast %c4_i32_18 : i32 to vector<2x8xi32>
      %37 = arith.addi %34, %36 : vector<2x8xi32>
      %38 = arith.cmpi slt, %32, %37 : vector<2x8xi32>
      %39 = arith.andi %35, %38 : vector<2x8xi1>
      %40 = arith.extui %39 : vector<2x8xi1> to vector<2x8xi32>
      %41 = arith.sitofp %40 : vector<2x8xi32> to vector<2x8xf32>
      %cst_19 = arith.constant dense<0.000000e+00> : vector<2x128xf32>
      %42 = tpu.matmul %41, %30, %cst_19 {dimension_numbers = #tpu.dot_dimension_numbers<[1], [0], [0], [1], [0, 0, 1, 1], [], []>} : vector<2x8xf32>, vector<8x128xf32>, vector<2x128xf32> -> vector<2x128xf32>
      %cst_20 = arith.constant dense<0.000000e+00> : vector<2xf32>
      %43 = vector.multi_reduction <add>, %42, %cst_20 [1] : vector<2x128xf32> to vector<2xf32>
      %44 = vector.shape_cast %43 : vector<2xf32> to vector<2x1xf32>
      %cst_21 = arith.constant 7.812500e-03 : f32
      %45 = vector.broadcast %cst_21 : f32 to vector<2x1xf32>
      %46 = arith.mulf %44, %45 : vector<2x1xf32>
      %c0_22 = arith.constant 0 : index
      %c0_23 = arith.constant 0 : index
      %47 = vector.load %arg5[%c0_22, %c0_23] : memref<1x128xf32, #tpu.memory_space<vmem>>, vector<1x128xf32>
      %48 = vector.broadcast %46 : vector<2x1xf32> to vector<2x128xf32>
      %49 = vector.broadcast %47 : vector<1x128xf32> to vector<2x128xf32>
      %50 = arith.mulf %48, %49 : vector<2x128xf32>
      %c0_24 = arith.constant 0 : index
      %c0_25 = arith.constant 0 : index
      %51 = vector.load %arg6[%c0_24, %c0_25] : memref<1x128xf32, #tpu.memory_space<vmem>>, vector<1x128xf32>
      %52 = vector.broadcast %51 : vector<1x128xf32> to vector<2x128xf32>
      %53 = arith.addf %50, %52 : vector<2x128xf32>
      %c0_26 = arith.constant 0 : index
      %c0_27 = arith.constant 0 : index
      %c0_28 = arith.constant 0 : index
      %54 = vector.load %arg7[%c0_26, %c0_27, %c0_28] : memref<1x2x128xf32, #tpu.memory_space<vmem>>, vector<1x2x128xf32>
      %55 = vector.shape_cast %54 : vector<1x2x128xf32> to vector<2x128xf32>
      %56 = vector.shape_cast %53 : vector<2x128xf32> to vector<1x2x128xf32>
      tpu.vector_store %arg7[%c0_26, %c0_27, %c0_28], %56 {strides = array<i32>} : memref<1x2x128xf32, #tpu.memory_space<vmem>>, vector<1x2x128xf32>,
    } else {
    }
    return
  }
  func.func @transform_0(%arg0: i32, %arg1: i32) -> (i32, i32, i32) {
    %c0_i32 = arith.constant 0 : i32
    %c0_i32_0 = arith.constant 0 : i32
    return %arg0, %c0_i32, %arg1 : i32, i32, i32
  }
  func.func @transform_1(%arg0: i32, %arg1: i32) -> (i32, i32) {
    %c0_i32 = arith.constant 0 : i32
    %c0_i32_0 = arith.constant 0 : i32
    return %arg1, %c0_i32 : i32, i32
  }
  func.func @transform_2(%arg0: i32, %arg1: i32) -> (i32, i32) {
    %c0_i32 = arith.constant 0 : i32
    %c0_i32_0 = arith.constant 0 : i32
    %c0_i32_1 = arith.constant 0 : i32
    return %c0_i32, %c0_i32_0 : i32, i32
  }
  func.func @transform_3(%arg0: i32, %arg1: i32) -> (i32, i32) {
    %c0_i32 = arith.constant 0 : i32
    %c0_i32_0 = arith.constant 0 : i32
    %c0_i32_1 = arith.constant 0 : i32
    return %c0_i32, %c0_i32_0 : i32, i32
  }
  func.func @transform_4(%arg0: i32, %arg1: i32) -> (i32, i32) {
    %c0_i32 = arith.constant 0 : i32
    %c0_i32_0 = arith.constant 0 : i32
    %c0_i32_1 = arith.constant 0 : i32
    return %c0_i32, %c0_i32_0 : i32, i32
  }
  func.func @transform_5(%arg0: i32, %arg1: i32) -> (i32, i32, i32) {
    %c0_i32 = arith.constant 0 : i32
    %c0_i32_0 = arith.constant 0 : i32
    %c0_i32_1 = arith.constant 0 : i32
    return %arg0, %c0_i32, %c0_i32_0 : i32, i32, i32
  }
}

</mosaic_0001>

<llo_original>
// kernel: tpu_custom_call.1
$region0: #{tpu_custom_call.1}
  #allocation0 [shape = 'u32[]', space=smem, size = 0x4, offset = 0x4, fixed_abs, tag = 'smem constant byte address 0x4 - core index']
  #allocation1 [shape = 'u32[144,128]{1,0:T(1,128)}', space=vmem, size = 0x12000, scoped, tag = 'internal scratch']
  #allocation2 [shape = 'f32[8,128]{1,0:T(8,128)}', space=vmem, size = 0x1000, scoped, tag = 'scratch operand']
  %s0 = inlined_call_operand.hbm [shape: f32[2,8,1024], index: 0, kind: input, shape index: {}]
  %s1 = inlined_call_operand.hbm [shape: bf16[1024,128], index: 1, kind: input, shape index: {}]
  %s2 = inlined_call_operand.vmem [shape: f32[1,128], index: 2, kind: input, shape index: {}]
  %s3 = inlined_call_operand.vmem [shape: f32[1,128], index: 3, kind: input, shape index: {}]
  %s4 = inlined_call_operand.vmem [shape: f32[1,128], index: 4, kind: input, shape index: {}]
  %s5 = inlined_call_operand.hbm [shape: f32[2,2,128], index: 5, kind: output, shape index: {}]
  %s6 = sld [smem:[#allocation0]]
  $region69: #{tpu_custom_call.1} parent=0
    _
  %s8 = ssub.s32 1, %s6
  %s9 = scalar_select 0, %s8, %s6
  $region1: #{tpu_custom_call.1} parent=0
    #allocation3 [shape = 'u8[16384]{0}', space=vmem, size = 0x4000, scoped, tag = 'input window, operand 0']
    #allocation4 [shape = 's32[2]{0}', space=sflag, size = 0x8, scoped, tag = 'scoped memory for tpu_custom_call.1']
    #allocation5 [shape = 's32[2]{0}', space=sflag, size = 0x8, scoped, tag = 'scoped memory for tpu_custom_call.1']
    #allocation6 [shape = 'u8[131072]{0}', space=vmem, size = 0x20000, scoped, tag = 'input window, operand 1']
    #allocation7 [shape = 's32[2]{0}', space=sflag, size = 0x8, scoped, tag = 'scoped memory for tpu_custom_call.1']
    #allocation8 [shape = 'u8[2048]{0}', space=vmem, size = 0x800, scoped, tag = 'output window, operand 0']
    %10 = vsyncpa [#allocation4], 0
    %s11 = scalar_lea.sflag [#allocation4], 1
    %12 = vsyncpa %s11, 0
    %13 = vsyncpa [#allocation7], 0
    %s14 = scalar_lea.sflag [#allocation7], 1
    %15 = vsyncpa %s14, 0
    %16 = vsyncpa [#allocation5], 0
    %s17 = scalar_lea.sflag [#allocation5], 1
    %18 = vsyncpa %s17, 0
    loop: start=0, step=1, limit=10
    $region2: #{tpu_custom_call.1} parent=1 // loop_pre_header
      _
    $region3: #{tpu_custom_call.1} parent=1 // loop_header
      %s20 = sphi 0, %s24
      %p21 = scmp.ge.s32.totalorder %s20, 10
      %s27 = sphi 0, %s39
      %s28 = sphi 0, %s35
      %s29 = sphi 0, %s27
      %s30 = sphi 0, %s28
      %s31 = sphi 0, %s29
      %s32 = sphi 0, %s30
      %s44 = sphi 0, %s46
      %s47 = sphi 0, %s44
      %s48 = sphi 0, %s47
      %s64 = sphi 0, %s48
      %s70 = sphi 0, %s72
      %s73 = sphi 0, %s70
      %s74 = sphi 0, %s73
      %s90 = sphi 0, %s74
      %s94 = sphi 0, %s94
      %s96 = sphi 0, %s94
      %s97 = sphi 0, %s96
      %s111 = sphi 0, %s97
      %s115 = sphi 0, %s115
      %s117 = sphi 0, %s115
      %s118 = sphi 0, %s117
      %s132 = sphi 0, %s118
      %s136 = sphi 0, %s136
      %s138 = sphi 0, %s136
      %s139 = sphi 0, %s138
      %s153 = sphi 0, %s139
      %s159 = sphi 0, %s161
      %s162 = sphi 0, %s159
      %s163 = sphi 0, %s162
      %s179 = sphi 0, %s163
    $region4: #{tpu_custom_call.1} parent=1 // loop_header_branch
      %23 = sbr.rel (%p21) target = $region8
    $region5: #{tpu_custom_call.1} parent=1 // loop_body
      %s25 = ssub.s32 %s20, 1
      %s26 = ssub.s32 %s20, 2
      %s33 = sadd.s32 1, %s28
      %p34 = scmp.ge.s32.totalorder %s33, 4
      %s35 = scalar_select %p34, 0, %s33
      %s36 = sadd.s32 1, %s27
      %s37 = scalar_select %p34, %s36, %s27
      %p38 = scmp.ge.s32.totalorder %s37, 2
      %s39 = scalar_select %p38, 0, %s37
      %s40 = ssub.s32 %s27, %s39
      %s41 = ssub.s32 %s28, %s35
      %s42 = sor.u32 %s40, %s41
      %p43 = scmp.eq.s32.totalorder %s42, 0
      %s45 = sadd.s32 %s44, 1
      %s46 = scalar_select %p43, %s44, %s45
      %p49 = pneg %p43
      %p50 = scmp.eq.s32.totalorder %s20, 7
      %p51 = por %p49, %p50
      %p52 = scmp.ne.s32.totalorder %s44, %s47
      %p53 = scmp.eq.s32.totalorder %s20, 0
      %p54 = por %p52, %p53
      %p55 = scmp.ne.s32.totalorder %s44, %s47
      %p56 = scmp.eq.s32.totalorder %s25, 7
      %p57 = por %p55, %p56
      %p58 = scmp.ne.s32.totalorder %s47, %s48
      %p59 = scmp.eq.s32.totalorder %s25, 0
      %p60 = por %p58, %p59
      %p61 = scmp.ne.s32.totalorder %s47, %s48
      %p62 = scmp.eq.s32.totalorder %s26, 7
      %p63 = por %p61, %p62
      %p65 = scmp.ne.s32.totalorder %s48, %s64
      %p66 = scmp.eq.s32.totalorder %s26, 0
      %p67 = por %p65, %p66
      %s68 = ssub.s32 %s28, %s35
      %p69 = scmp.eq.s32.totalorder %s68, 0
      %s71 = sadd.s32 %s70, 1
      %s72 = scalar_select %p69, %s70, %s71
      %p75 = pneg %p69
      %p76 = scmp.eq.s32.totalorder %s20, 7
      %p77 = por %p75, %p76
      %p78 = scmp.ne.s32.totalorder %s70, %s73
      %p79 = scmp.eq.s32.totalorder %s20, 0
      %p80 = por %p78, %p79
      %p81 = scmp.ne.s32.totalorder %s70, %s73
      %p82 = scmp.eq.s32.totalorder %s25, 7
      %p83 = por %p81, %p82
      %p84 = scmp.ne.s32.totalorder %s73, %s74
      %p85 = scmp.eq.s32.totalorder %s25, 0
      %p86 = por %p84, %p85
      %p87 = scmp.ne.s32.totalorder %s73, %s74
      %p88 = scmp.eq.s32.totalorder %s26, 7
      %p89 = por %p87, %p88
      %p91 = scmp.ne.s32.totalorder %s74, %s90
      %p92 = scmp.eq.s32.totalorder %s26, 0
      %p93 = por %p91, %p92
      %s95 = sadd.s32 %s94, 1
      %p98 = scmp.eq.s32.totalorder %s20, 7
      %p99 = scmp.ne.s32.totalorder %s94, %s96
      %p100 = scmp.eq.s32.totalorder %s20, 0
      %p101 = por %p99, %p100
      %p102 = scmp.ne.s32.totalorder %s94, %s96
      %p103 = scmp.eq.s32.totalorder %s25, 7
      %p104 = por %p102, %p103
      %p105 = scmp.ne.s32.totalorder %s96, %s97
      %p106 = scmp.eq.s32.totalorder %s25, 0
      %p107 = por %p105, %p106
      %p108 = scmp.ne.s32.totalorder %s96, %s97
      %p109 = scmp.eq.s32.totalorder %s26, 7
      %p110 = por %p108, %p109
      %p112 = scmp.ne.s32.totalorder %s97, %s111
      %p113 = scmp.eq.s32.totalorder %s26, 0
      %p114 = por %p112, %p113
      %s116 = sadd.s32 %s115, 1
      %p119 = scmp.eq.s32.totalorder %s20, 7
      %p120 = scmp.ne.s32.totalorder %s115, %s117
      %p121 = scmp.eq.s32.totalorder %s20, 0
      %p122 = por %p120, %p121
      %p123 = scmp.ne.s32.totalorder %s115, %s117
      %p124 = scmp.eq.s32.totalorder %s25, 7
      %p125 = por %p123, %p124
      %p126 = scmp.ne.s32.totalorder %s117, %s118
      %p127 = scmp.eq.s32.totalorder %s25, 0
      %p128 = por %p126, %p127
      %p129 = scmp.ne.s32.totalorder %s117, %s118
      %p130 = scmp.eq.s32.totalorder %s26, 7
      %p131 = por %p129, %p130
      %p133 = scmp.ne.s32.totalorder %s118, %s132
      %p134 = scmp.eq.s32.totalorder %s26, 0
      %p135 = por %p133, %p134
      %s137 = sadd.s32 %s136, 1
      %p140 = scmp.eq.s32.totalorder %s20, 7
      %p141 = scmp.ne.s32.totalorder %s136, %s138
      %p142 = scmp.eq.s32.totalorder %s20, 0
      %p143 = por %p141, %p142
      %p144 = scmp.ne.s32.totalorder %s136, %s138
      %p145 = scmp.eq.s32.totalorder %s25, 7
      %p146 = por %p144, %p145
      %p147 = scmp.ne.s32.totalorder %s138, %s139
      %p148 = scmp.eq.s32.totalorder %s25, 0
      %p149 = por %p147, %p148
      %p150 = scmp.ne.s32.totalorder %s138, %s139
      %p151 = scmp.eq.s32.totalorder %s26, 7
      %p152 = por %p150, %p151
      %p154 = scmp.ne.s32.totalorder %s139, %s153
      %p155 = scmp.eq.s32.totalorder %s26, 0
      %p156 = por %p154, %p155
      %s157 = ssub.s32 %s27, %s39
      %p158 = scmp.eq.s32.totalorder %s157, 0
      %s160 = sadd.s32 %s159, 1
      %s161 = scalar_select %p158, %s159, %s160
      %p164 = pneg %p158
      %p165 = scmp.eq.s32.totalorder %s20, 7
      %p166 = por %p164, %p165
      %p167 = scmp.ne.s32.totalorder %s159, %s162
      %p168 = scmp.eq.s32.totalorder %s20, 0
      %p169 = por %p167, %p168
      %p170 = scmp.ne.s32.totalorder %s159, %s162
      %p171 = scmp.eq.s32.totalorder %s25, 7
      %p172 = por %p170, %p171
      %p173 = scmp.ne.s32.totalorder %s162, %s163
      %p174 = scmp.eq.s32.totalorder %s25, 0
      %p175 = por %p173, %p174
      %p176 = scmp.ne.s32.totalorder %s162, %s163
      %p177 = scmp.eq.s32.totalorder %s26, 7
      %p178 = por %p176, %p177
      %p180 = scmp.ne.s32.totalorder %s163, %s179
      %p181 = scmp.eq.s32.totalorder %s26, 0
      %p182 = por %p180, %p181
      %p183 = scmp.le.s32.totalorder 1, %s20
      %p184 = scmp.lt.s32.totalorder %s20, 9
      %p185 = pnand %p183, %p184
      %p186 = pneg %p185
      // Predicated region
      $region9: #{tpu_custom_call.1} parent=5 // pred_check
        _
      $region10: #{tpu_custom_call.1} parent=5 // pred_check_branch
        %188 = sbr.rel (%p185) target = $region12
      $region11: #{tpu_custom_call.1} parent=5 // pred_region
        %s189 = ssub.s32 %s20, 1
        // Predicated region
        $region13: #{tpu_custom_call.1} parent=11 // pred_check
          %p190 = pneg %p107
        $region14: #{tpu_custom_call.1} parent=11 // pred_check_branch
          %192 = sbr.rel (%p190) target = $region16
        $region15: #{tpu_custom_call.1} parent=11 // pred_region
          _
        $region16: #{tpu_custom_call.1} parent=11 // pred_fallthru
          _
        // Predicated region
        $region17: #{tpu_custom_call.1} parent=11 // pred_check
          %p193 = pneg %p128
        $region18: #{tpu_custom_call.1} parent=11 // pred_check_branch
          %195 = sbr.rel (%p193) target = $region20
        $region19: #{tpu_custom_call.1} parent=11 // pred_region
          _
        $region20: #{tpu_custom_call.1} parent=11 // pred_fallthru
          _
        // Predicated region
        $region21: #{tpu_custom_call.1} parent=11 // pred_check
          %p196 = pneg %p149
        $region22: #{tpu_custom_call.1} parent=11 // pred_check_branch
          %198 = sbr.rel (%p196) target = $region24
        $region23: #{tpu_custom_call.1} parent=11 // pred_region
          _
        $region24: #{tpu_custom_call.1} parent=11 // pred_fallthru
          _
      $region12: #{tpu_custom_call.1} parent=5 // pred_fallthru
        _
      %p199 = scmp.lt.s32.totalorder %s20, 8
      // Predicated region
      $region25: #{tpu_custom_call.1} parent=5 // pred_check
        %p200 = pneg %p199
      $region26: #{tpu_custom_call.1} parent=5 // pred_check_branch
        %202 = sbr.rel (%p200) target = $region28
      $region27: #{tpu_custom_call.1} parent=5 // pred_region
        // Predicated region
        $region29: #{tpu_custom_call.1} parent=27 // pred_check
          %p203 = pneg %p54
        $region30: #{tpu_custom_call.1} parent=27 // pred_check_branch
          %205 = sbr.rel (%p203) target = $region32
        $region31: #{tpu_custom_call.1} parent=27 // pred_region
          %s206 = sand.u32 %s44, 1
          %s207 = scalar_lea.sflag [#allocation4], %s206
          %s208 = sand.u32 %s44, 1
          %s209 = smul.addr %s208, 16
          %s210 = scalar_lea.vmem [#allocation3], %s209
          %s211 = smul.u32 2, %s28
          %s213 = ssub.s32 256, 256
          %214 = vsyncadd %s207, %s213
          %s215 = smul.addr %s27, 8
          %s216 = sadd.s32 %s211, %s215
          %s217 = smul.addr %s216, 128
          %s218 = scalar_lea.hbm %s0, %s217
          %s220 = sshll.u32 %s210, 4
          %s221 = int_to_ptr.vmem [resolvable:$true] %s220
          %223 = dma.hbm_to_vmem [thread:$0]  %s218, 256, %s221, %s207
        $region32: #{tpu_custom_call.1} parent=27 // pred_fallthru
          _
        // Predicated region
        $region33: #{tpu_custom_call.1} parent=27 // pred_check
          %p224 = pneg %p80
        $region34: #{tpu_custom_call.1} parent=27 // pred_check_branch
          %226 = sbr.rel (%p224) target = $region36
        $region35: #{tpu_custom_call.1} parent=27 // pred_region
          %s227 = sand.u32 %s70, 1
          %s228 = scalar_lea.sflag [#allocation7], %s227
          %s229 = sand.u32 %s70, 1
          %s230 = smul.addr %s229, 128
          %s231 = scalar_lea.vmem [#allocation6], %s230
          %s232 = smul.u32 32, %s28
          %s234 = ssub.s32 2048, 2048
          %235 = vsyncadd %s228, %s234
          %s236 = smul.addr %s232, 64
          %s237 = scalar_lea.hbm %s1, %s236
          %s238 = sshll.u32 %s231, 4
          %s239 = int_to_ptr.vmem [resolvable:$true] %s238
          %244 = dma.hbm_to_vmem [thread:$0]  %s237, 2048, %s239, %s228, 64, 64, 4
        $region36: #{tpu_custom_call.1} parent=27 // pred_fallthru
          _
      $region28: #{tpu_custom_call.1} parent=5 // pred_fallthru
        _
      %p245 = scmp.le.s32.totalorder 1, %s20
      %p246 = scmp.lt.s32.totalorder %s20, 9
      %p247 = pnand %p245, %p246
      %p248 = pneg %p247
      // Predicated region
      $region37: #{tpu_custom_call.1} parent=5 // pred_check
        _
      $region38: #{tpu_custom_call.1} parent=5 // pred_check_branch
        %250 = sbr.rel (%p247) target = $region40
      $region39: #{tpu_custom_call.1} parent=5 // pred_region
        %s251 = ssub.s32 %s20, 1
        %s252 = sand.u32 %s47, 1
        %s253 = scalar_lea.sflag [#allocation4], %s252
        %s254 = sand.u32 %s47, 1
        %s255 = smul.addr %s254, 16
        %s256 = scalar_lea.vmem [#allocation3], %s255
        // Predicated region
        $region41: #{tpu_custom_call.1} parent=39 // pred_check
          %p257 = pneg %p60
        $region42: #{tpu_custom_call.1} parent=39 // pred_check_branch
          %259 = sbr.rel (%p257) target = $region44
        $region43: #{tpu_custom_call.1} parent=39 // pred_region
          %260 = dma.done %s253, 256
        $region44: #{tpu_custom_call.1} parent=39 // pred_fallthru
          _
        %s261 = sand.u32 %s73, 1
        %s262 = scalar_lea.sflag [#allocation7], %s261
        %s263 = sand.u32 %s73, 1
        %s264 = smul.addr %s263, 128
        %s265 = scalar_lea.vmem [#allocation6], %s264
        // Predicated region
        $region45: #{tpu_custom_call.1} parent=39 // pred_check
          %p266 = pneg %p86
        $region46: #{tpu_custom_call.1} parent=39 // pred_check_branch
          %268 = sbr.rel (%p266) target = $region48
        $region47: #{tpu_custom_call.1} parent=39 // pred_region
          %269 = dma.done %s262, 2048
        $region48: #{tpu_custom_call.1} parent=39 // pred_fallthru
          _
        %s270 = sand.u32 %s47, 1
        %s271 = scalar_lea.sflag [#allocation4], %s270
        %s272 = sand.u32 %s47, 1
        %s273 = smul.addr %s272, 16
        %s274 = scalar_lea.vmem [#allocation3], %s273
        %p275 = pneg %p60
        %p276 = pneg %p57
        %s277 = sand.u32 %s73, 1
        %s278 = scalar_lea.sflag [#allocation7], %s277
        %s279 = sand.u32 %s73, 1
        %s280 = smul.addr %s279, 128
        %s281 = scalar_lea.vmem [#allocation6], %s280
        %p282 = pneg %p86
        %p283 = pneg %p83
        %p284 = pneg %p107
        %p285 = pneg %p104
        %p286 = pneg %p128
        %p287 = pneg %p125
        %p288 = pneg %p149
        %p289 = pneg %p146
        %p290 = pneg %p175
        %p291 = pneg %p172
        %s292 = sand.u32 %s162, 1
        %s293 = scalar_lea.sflag [#allocation5], %s292
        %s294 = sand.u32 %s162, 1
        %s295 = smul.addr %s294, 2
        %s296 = scalar_lea.vmem [#allocation8], %s295
        %s297 = smul.u32 2, %s30
        %s298 = smul.u32 32, %s30
        %p300 = scmp.eq.s32.totalorder %s30, 0
        // Predicated region
        $region49: #{tpu_custom_call.1} parent=39 // pred_check
          %p301 = pneg %p300
        $region50: #{tpu_custom_call.1} parent=39 // pred_check_branch
          %303 = sbr.rel (%p301) target = $region52
        $region51: #{tpu_custom_call.1} parent=39 // pred_region
          %304 = vst [vmem:[#allocation2] sm:$0xff] 0.0
        $region52: #{tpu_custom_call.1} parent=39 // pred_fallthru
          _
        %v305 = vld [vmem:[#allocation2] sm:$0xff]
        %v306 = vld [vmem:[%s256] sm:$0xff]
        %v307 = vld [vmem:[%s256 + $0x8] sm:$0xff]
        %v308 = vpack.c.bf16 %v306, %v306
        %v309 = vpack.c.bf16 %v307, %v307
        %v310 = vld [vmem:[%s265] sm:$0xf]
        %v311 = vld [vmem:[%s265 + $0x4] sm:$0xf]
        %v312 = vld [vmem:[%s265 + $0x8] sm:$0xf]
        %v313 = vld [vmem:[%s265 + $0xc] sm:$0xf]
        %v314 = vld [vmem:[%s265 + $0x10] sm:$0xf]
        %v315 = vld [vmem:[%s265 + $0x14] sm:$0xf]
        %v316 = vld [vmem:[%s265 + $0x18] sm:$0xf]
        %v317 = vld [vmem:[%s265 + $0x1c] sm:$0xf]
        %v318 = vld [vmem:[%s265 + $0x20] sm:$0xf]
        %v319 = vld [vmem:[%s265 + $0x24] sm:$0xf]
        %v320 = vld [vmem:[%s265 + $0x28] sm:$0xf]
        %v321 = vld [vmem:[%s265 + $0x2c] sm:$0xf]
        %v322 = vld [vmem:[%s265 + $0x30] sm:$0xf]
        %v323 = vld [vmem:[%s265 + $0x34] sm:$0xf]
        %v324 = vld [vmem:[%s265 + $0x38] sm:$0xf]
        %v325 = vld [vmem:[%s265 + $0x3c] sm:$0xf]
        %v326 = vld [vmem:[%s265 + $0x40] sm:$0xf]
        %v327 = vld [vmem:[%s265 + $0x44] sm:$0xf]
        %v328 = vld [vmem:[%s265 + $0x48] sm:$0xf]
        %v329 = vld [vmem:[%s265 + $0x4c] sm:$0xf]
        %v330 = vld [vmem:[%s265 + $0x50] sm:$0xf]
        %v331 = vld [vmem:[%s265 + $0x54] sm:$0xf]
        %v332 = vld [vmem:[%s265 + $0x58] sm:$0xf]
        %v333 = vld [vmem:[%s265 + $0x5c] sm:$0xf]
        %v334 = vld [vmem:[%s265 + $0x60] sm:$0xf]
        %v335 = vld [vmem:[%s265 + $0x64] sm:$0xf]
        %v336 = vld [vmem:[%s265 + $0x68] sm:$0xf]
        %v337 = vld [vmem:[%s265 + $0x6c] sm:$0xf]
        %v338 = vld [vmem:[%s265 + $0x70] sm:$0xf]
        %v339 = vld [vmem:[%s265 + $0x74] sm:$0xf]
        %v340 = vld [vmem:[%s265 + $0x78] sm:$0xf]
        %v341 = vld [vmem:[%s265 + $0x7c] sm:$0xf]
        %v374 = vunpack.c.l.b16 %v310
        %v375 = vunpack.c.l.b16 %v311
        %v376 = vunpack.c.l.b16 %v312
        %v377 = vunpack.c.l.b16 %v313
        %v378 = vunpack.c.l.b16 %v314
        %v379 = vunpack.c.l.b16 %v315
        %v380 = vunpack.c.l.b16 %v316
        %v381 = vunpack.c.l.b16 %v317
        %v382 = vunpack.c.l.b16 %v318
        %v383 = vunpack.c.l.b16 %v319
        %v384 = vunpack.c.l.b16 %v320
        %v385 = vunpack.c.l.b16 %v321
        %v386 = vunpack.c.l.b16 %v322
        %v387 = vunpack.c.l.b16 %v323
        %v388 = vunpack.c.l.b16 %v324
        %v389 = vunpack.c.l.b16 %v325
        %v390 = vunpack.c.l.b16 %v326
        %v391 = vunpack.c.l.b16 %v327
        %v392 = vunpack.c.l.b16 %v328
        %v393 = vunpack.c.l.b16 %v329
        %v394 = vunpack.c.l.b16 %v330
        %v395 = vunpack.c.l.b16 %v331
        %v396 = vunpack.c.l.b16 %v332
        %v397 = vunpack.c.l.b16 %v333
        %v398 = vunpack.c.l.b16 %v334
        %v399 = vunpack.c.l.b16 %v335
        %v400 = vunpack.c.l.b16 %v336
        %v401 = vunpack.c.l.b16 %v337
        %v402 = vunpack.c.l.b16 %v338
        %v403 = vunpack.c.l.b16 %v339
        %v404 = vunpack.c.l.b16 %v340
        %v405 = vunpack.c.l.b16 %v341
        %v406 = vpack.c.b16 %v375, %v374
        %v407 = vpack.c.b16 %v377, %v376
        %v408 = vpack.c.b16 %v379, %v378
        %v409 = vpack.c.b16 %v381, %v380
        %v410 = vpack.c.b16 %v383, %v382
        %v411 = vpack.c.b16 %v385, %v384
        %v412 = vpack.c.b16 %v387, %v386
        %v413 = vpack.c.b16 %v389, %v388
        %v414 = vpack.c.b16 %v391, %v390
        %v415 = vpack.c.b16 %v393, %v392
        %v416 = vpack.c.b16 %v395, %v394
        %v417 = vpack.c.b16 %v397, %v396
        %v418 = vpack.c.b16 %v399, %v398
        %v419 = vpack.c.b16 %v401, %v400
        %v420 = vpack.c.b16 %v403, %v402
        %v421 = vpack.c.b16 %v405, %v404
        %438 = vmatprep.subr.bf16.mxu0 0
        %439 = vmatpush1.bf16.msra.mxu0 %v406
        %440 = vmatprep.subr.bf16.mxu0 0
        %441 = vmatpush1.bf16.msra.mxu0 %v407
        %442 = vmatprep.subr.bf16.mxu0 0
        %443 = vmatpush1.bf16.msra.mxu0 %v408
        %444 = vmatprep.subr.bf16.mxu0 0
        %445 = vmatpush1.bf16.msra.mxu0 %v409
        %446 = vmatprep.subr.bf16.mxu0 0
        %447 = vmatpush1.bf16.msra.mxu0 %v410
        %448 = vmatprep.subr.bf16.mxu0 0
        %449 = vmatpush1.bf16.msra.mxu0 %v411
        %450 = vmatprep.subr.bf16.mxu0 0
        %451 = vmatpush1.bf16.msra.mxu0 %v412
        %452 = vmatprep.subr.bf16.mxu0 0
        %453 = vmatpush1.bf16.msra.mxu0 %v413
        %454 = vmatprep.subr.bf16.mxu0 0
        %455 = vmatpush1.bf16.msra.mxu0 %v414
        %456 = vmatprep.subr.bf16.mxu0 0
        %457 = vmatpush1.bf16.msra.mxu0 %v415
        %458 = vmatprep.subr.bf16.mxu0 0
        %459 = vmatpush1.bf16.msra.mxu0 %v416
        %460 = vmatprep.subr.bf16.mxu0 0
        %461 = vmatpush1.bf16.msra.mxu0 %v417
        %462 = vmatprep.subr.bf16.mxu0 0
        %463 = vmatpush1.bf16.msra.mxu0 %v418
        %464 = vmatprep.subr.bf16.mxu0 0
        %465 = vmatpush1.bf16.msra.mxu0 %v419
        %466 = vmatprep.subr.bf16.mxu0 0
        %467 = vmatpush1.bf16.msra.mxu0 %v420
        %468 = vmatprep.subr.bf16.mxu0 0
        %469 = vmatpush1.bf16.msra.mxu0 %v421
        %470 = vmatprep.mubr.bf16.mxu0 %v309
        %471 = vmatmul.mubr.bf16.gmra.mrb[0].mxu0 %v308
        %v472 = vpop.f32.mrb[0].mxu0
        %v473 = vadd.f32 0.0, %v472
        %v474 = vpop.f32.mrb[0].mxu0
        %v475 = vpop.f32.mrb[0].mxu0
        %v476 = vpop.f32.mrb[0].mxu0
        %477 = vdwg.mxu0
        %v478 = vadd.f32 %v305, %v473
        %479 = vst [vmem:[#allocation2] sm:$0xff] %v478
        %p480 = scmp.eq.s32.totalorder %s30, 3
        // Predicated region
        $region53: #{tpu_custom_call.1} parent=39 // pred_check
          %p481 = pneg %p480
        $region54: #{tpu_custom_call.1} parent=39 // pred_check_branch
          %483 = sbr.rel (%p481) target = $region56
        $region55: #{tpu_custom_call.1} parent=39 // pred_region
          %v484 = vld [vmem:[#allocation2] sm:$0xff]
          %v485 = vld [vmem:[%s2] sm:$0x1]
          %v487 = vlaneseq
          %v488 = vshrl.u32 %v487, 7
          %v489 = vsub.s32 0, %v488
          %v490 = vrot.slane %v485, %v489
          %v492 = vadd.f32 %v484, %v490
          %v493 = vmul.f32 %v492, %v492
          %v494 = vmul.f32 %v492, %v493
          %v495 = vmul.f32 %v494, 0.044715
          %v496 = vadd.f32 %v492, %v495
          %v497 = vmul.f32 %v496, 0.7978846
          %v498 = vtanh.pop %v497
          %v499 = vadd.f32 %v498, 1.0
          %v500 = vmul.f32 %v499, 0.5
          %v501 = vmul.f32 %v492, %v500
          %v502 = vlaneseq
          %v503 = vshrl.u32 %v502, 7
          %v504 = vlaneseq
          %v505 = vand.u32 %v504, 127
          %v506 = vmul.u32 %v503, 4
          %vm507 = vcmp.ge.s32.totalorder %v505, %v506
          %v508 = vadd.s32 %v506, 4
          %vm509 = vcmp.lt.s32.totalorder %v505, %v508
          %vm510 = vmand %vm507, %vm509
          %v511 = vsel %vm510, 1, 0
          %v512 = vcvt.s32.f32 %v511
          %vm513 = vcmask 64512
          %v515 = vsel %vm513, %v512, 0
          %517 = vmatprep.subr.mxu0 0.0
          %518 = vmatpush1.msra.mxu0 %v501
          %519 = vmatprep.subr.mxu0 0.0
          %520 = vmatpush1.msra.mxu0 0.0
          %521 = vmatprep.subr.mxu0 0.0
          %522 = vmatpush1.msra.mxu0 0.0
          %523 = vmatprep.subr.mxu0 0.0
          %524 = vmatpush1.msra.mxu0 0.0
          %525 = vmatprep.subr.mxu0 0.0
          %526 = vmatpush1.msra.mxu0 0.0
          %527 = vmatprep.subr.mxu0 0.0
          %528 = vmatpush1.msra.mxu0 0.0
          %529 = vmatprep.subr.mxu0 0.0
          %530 = vmatpush1.msra.mxu0 0.0
          %531 = vmatprep.subr.mxu0 0.0
          %532 = vmatpush1.msra.mxu0 0.0
          %533 = vmatprep.subr.mxu0 0.0
          %534 = vmatpush1.msra.mxu0 0.0
          %535 = vmatprep.subr.mxu0 0.0
          %536 = vmatpush1.msra.mxu0 0.0
          %537 = vmatprep.subr.mxu0 0.0
          %538 = vmatpush1.msra.mxu0 0.0
          %539 = vmatprep.subr.mxu0 0.0
          %540 = vmatpush1.msra.mxu0 0.0
          %541 = vmatprep.subr.mxu0 0.0
          %542 = vmatpush1.msra.mxu0 0.0
          %543 = vmatprep.subr.mxu0 0.0
          %544 = vmatpush1.msra.mxu0 0.0
          %545 = vmatprep.subr.mxu0 0.0
          %546 = vmatpush1.msra.mxu0 0.0
          %547 = vmatprep.subr.mxu0 0.0
          %548 = vmatpush1.msra.mxu0 0.0
          %549 = vmatprep.subr.mxu0 0.0
          %550 = vmatpush1.msra.mxu0 0.0
          %551 = vmatprep.subr.mxu0 0.0
          %552 = vmatpush1.msra.mxu0 0.0
          %553 = vmatprep.subr.mxu0 0.0
          %554 = vmatpush1.msra.mxu0 0.0
          %555 = vmatprep.subr.mxu0 0.0
          %556 = vmatpush1.msra.mxu0 0.0
          %557 = vmatprep.subr.mxu0 0.0
          %558 = vmatpush1.msra.mxu0 0.0
          %559 = vmatprep.subr.mxu0 0.0
          %560 = vmatpush1.msra.mxu0 0.0
          %561 = vmatprep.subr.mxu0 0.0
          %562 = vmatpush1.msra.mxu0 0.0
          %563 = vmatprep.subr.mxu0 0.0
          %564 = vmatpush1.msra.mxu0 0.0
          %565 = vmatprep.subr.mxu0 0.0
          %566 = vmatpush1.msra.mxu0 0.0
          %567 = vmatprep.subr.mxu0 0.0
          %568 = vmatpush1.msra.mxu0 0.0
          %569 = vmatprep.subr.mxu0 0.0
          %570 = vmatpush1.msra.mxu0 0.0
          %571 = vmatprep.subr.mxu0 0.0
          %572 = vmatpush1.msra.mxu0 0.0
          %573 = vmatprep.subr.mxu0 0.0
          %574 = vmatpush1.msra.mxu0 0.0
          %575 = vmatprep.subr.mxu0 0.0
          %576 = vmatpush1.msra.mxu0 0.0
          %577 = vmatprep.subr.mxu0 0.0
          %578 = vmatpush1.msra.mxu0 0.0
          %579 = vmatprep.subr.mxu0 0.0
          %580 = vmatpush1.msra.mxu0 0.0
          %581 = vmatprep.mubr.f32.mxu0 0.0
          %582 = vmatmul.mubr.f32.gmra.mrb[0].mxu0 %v515
          %v583 = vpop.f32.mrb[0].mxu0
          %v584 = vadd.f32 0.0, %v583
          %v585 = vpop.f32.mrb[0].mxu0
          %586 = vdwg.mxu0
          %vm587 = vcmask 1041408
          %v588 = vsel %vm587, %v584, 0.0
          %589 = vadd.xlane.f32.xlu0 %v588
          %v590 = vpop.xlane.xlu0 %589
          %v591 = vmul.f32 %v590, 0.0078125
          %v592 = vld [vmem:[%s3] sm:$0x1]
          %v594 = vlaneseq
          %v595 = vshrl.u32 %v594, 7
          %v596 = vsub.s32 0, %v595
          %v597 = vrot.slane %v592, %v596
          %v599 = vmul.f32 %v591, %v597
          %v600 = vld [vmem:[%s4] sm:$0x1]
          %v602 = vlaneseq
          %v603 = vshrl.u32 %v602, 7
          %v604 = vsub.s32 0, %v603
          %v605 = vrot.slane %v600, %v604
          %v607 = vadd.f32 %v599, %v605
          %608 = vst [vmem:[%s296] sm:$0x3] %v607
        $region56: #{tpu_custom_call.1} parent=39 // pred_fallthru
          _
        %s609 = sand.u32 %s162, 1
        %s610 = scalar_lea.sflag [#allocation5], %s609
        %s611 = sand.u32 %s162, 1
        %s612 = smul.addr %s611, 2
        %s613 = scalar_lea.vmem [#allocation8], %s612
        // Predicated region
        $region57: #{tpu_custom_call.1} parent=39 // pred_check
          %p614 = pneg %p172
        $region58: #{tpu_custom_call.1} parent=39 // pred_check_branch
          %616 = sbr.rel (%p614) target = $region60
        $region59: #{tpu_custom_call.1} parent=39 // pred_region
          %s618 = ssub.s32 32, 32
          %619 = vsyncadd %s610, %s618
          %s620 = smul.addr %s29, 32
          %s621 = scalar_lea.hbm %s5, %s620
          %s623 = sshll.u32 %s613, 4
          %s624 = int_to_ptr.vmem [resolvable:$true] %s623
          %626 = dma.vmem_to_hbm [thread:$0]  %s624, 32, %s621, %s610
        $region60: #{tpu_custom_call.1} parent=39 // pred_fallthru
          _
      $region40: #{tpu_custom_call.1} parent=5 // pred_fallthru
        _
      %p627 = scmp.le.s32.totalorder 2, %s20
      // Predicated region
      $region61: #{tpu_custom_call.1} parent=5 // pred_check
        %p628 = pneg %p627
      $region62: #{tpu_custom_call.1} parent=5 // pred_check_branch
        %630 = sbr.rel (%p628) target = $region64
      $region63: #{tpu_custom_call.1} parent=5 // pred_region
        %s631 = ssub.s32 %s20, 2
        // Predicated region
        $region65: #{tpu_custom_call.1} parent=63 // pred_check
          %p632 = pneg %p178
        $region66: #{tpu_custom_call.1} parent=63 // pred_check_branch
          %634 = sbr.rel (%p632) target = $region68
        $region67: #{tpu_custom_call.1} parent=63 // pred_region
          %s635 = sand.u32 %s163, 1
          %s636 = scalar_lea.sflag [#allocation5], %s635
          %s637 = sand.u32 %s163, 1
          %s638 = smul.addr %s637, 2
          %s639 = scalar_lea.vmem [#allocation8], %s638
          %640 = dma.done %s636, 32
        $region68: #{tpu_custom_call.1} parent=63 // pred_fallthru
          _
      $region64: #{tpu_custom_call.1} parent=5 // pred_fallthru
        _
    $region6: #{tpu_custom_call.1} parent=1 // loop_footer
      %s24 = sadd.s32 1, %s20
    $region7: #{tpu_custom_call.1} parent=1 // loop_footer_branch
      %19 = sbr.rel target = $region3
    $region8: #{tpu_custom_call.1} parent=1 // loop_exit
      _
    %641 = vsyncpa [#allocation4], 1
    %s642 = scalar_lea.sflag [#allocation4], 1
    %643 = vsyncpa %s642, 1
    %644 = vsyncpa [#allocation7], 1
    %s645 = scalar_lea.sflag [#allocation7], 1
    %646 = vsyncpa %s645, 1
    %647 = vsyncpa [#allocation5], 1
    %s648 = scalar_lea.sflag [#allocation5], 1
    %649 = vsyncpa %s648, 1

</llo_original>
